<compile_context>
chip_gen: v7x
topology: tpu7x:2x2x1
jax: 0.10.0
libtpu: 0.0.40
codegen_flags: <defaults>
</compile_context>

<pallas_src>
import functools

import jax
import jax.numpy as jnp
from jax.experimental import pallas as pl
from jax.experimental.pallas import tpu as pltpu


def _device_kind():
    try:
        return jax.devices()[0].device_kind.lower()
    except Exception:
        return ""


def _round_up(v, m):
    return -(-v // m) * m


def _choose_tiles(g, l, n, l_out_s1, n_out, itemsize, stride, kernel_size):
    """Pick (batch_tile, lane_tile, vmem_limit_bytes) from a per-generation VMEM budget."""
    kind = _device_kind()
    is_v7 = ("v7" in kind) or ("7x" in kind)
    if is_v7:
        vmem_limit = 32 * 1024 * 1024            # v7x: 64 MiB physical per TensorCore
    elif ("v5" in kind) or ("v6" in kind):
        vmem_limit = 64 * 1024 * 1024            # v5e/v6e: 128 MiB physical
    else:
        vmem_limit = 32 * 1024 * 1024            # unknown chip: safe everywhere
    budget = vmem_limit - 8 * 1024 * 1024        # headroom for pipeline bookkeeping

    n_tmp = kernel_size.bit_length() + 2         # live f32 temporaries in the add chain

    def block_bytes(bt, ct):
        lanes = _round_up(ct, 128)               # VMEM footprint is (8,128)-padded
        in_b = bt * _round_up(l, 8) * lanes * itemsize
        out_b = bt * _round_up(n_out, 8) * lanes * itemsize
        tmp = bt * _round_up(l, 8) * lanes * 4
        scr = bt * _round_up(l_out_s1, 8) * lanes * 4 if stride > 1 else 0
        return 2 * in_b + 2 * out_b + n_tmp * tmp + scr   # 2x = double buffering

    # Lane tile: full width when modest, else 512 (multiple of 128; ragged tail masked).
    ct = n if n <= 512 else 512
    while block_bytes(1, ct) > budget and ct > 128:
        ct = max(128, _round_up(ct // 2, 128))
    # Batch tile: grow while the block still fits (amortizes the ~0.35us/step overhead).
    bt = 1
    while bt < g and block_bytes(min(2 * bt, g), ct) <= budget:
        bt = min(2 * bt, g)

    # v7x megacore only: make sure there are >= 2 grid steps so both TCs get work.
    if is_v7 and pl.cdiv(g, bt) * pl.cdiv(n, ct) < 2:
        if g >= 2:
            bt = pl.cdiv(g, 2)
        elif n >= 256:
            ct = _round_up(pl.cdiv(n, 2), 128)
    return bt, ct, vmem_limit


def _moving_avg_kernel(x_ref, o_ref, *scratch, kernel_size, pad, stride):
    # x_ref: (bt, L, ct) block; o_ref: (bt, n_out, ct) block.  Time is the sublane axis.
    l = x_ref.shape[1]
    n_int = l - kernel_size + 1                  # fully-interior stride-1 windows
    l_out_s1 = l + 2 * pad - kernel_size + 1     # all stride-1 output rows
    inv_k = jnp.float32(1.0 / kernel_size)

    x = x_ref[...].astype(jnp.float32)           # cast once per block (v5e: no bf16 VPU)

    # Powers-of-two partial sums: pows[b][:, i, :] = sum_{j < 2^b} x[:, i+j, :].
    msb = kernel_size.bit_length() - 1
    pows = [x]
    for b in range(1, msb + 1):
        prev = pows[-1]
        m = 1 << (b - 1)
        cnt = prev.shape[1] - m
        pows.append(prev[:, :cnt, :] + prev[:, m:m + cnt, :])

    # Merge MSB->LSB: every merge offset >= 8 lands on a sublane boundary (aligned add).
    w = None
    off = 0
    for b in range(msb, -1, -1):
        if (kernel_size >> b) & 1:
            piece = pows[b][:, off:off + n_int, :]
            w = piece if w is None else w + piece
            off += 1 << b
    # w[:, i, :] = sum_{j < K} x[:, i+j, :]   (interior window sums)

    if stride == 1:
        def put(rows, val):                      # scale + cast + store straight to HBM block
            o_ref[:, rows, :] = (val * inv_k).astype(o_ref.dtype)
    else:
        s_ref = scratch[0]                       # stride-1 sums stay in VMEM

        def put(rows, val):
            s_ref[:, rows, :] = val

    put(slice(pad, pad + n_int), w)

    # Replicate-pad boundary rows, patched analytically (no padded copy of x is built).
    if pad > 0:
        x0 = x[:, 0:1, :]
        s = w[:, 0:1, :]
        for t in range(pad - 1, -1, -1):         # S[t] = S[t+1] + x[0] - x[t+K-pad]
            j = t + kernel_size - pad
            s = s + x0 - x[:, j:j + 1, :]
            put(slice(t, t + 1), s)
        xl = x[:, l - 1:l, :]
        s = w[:, n_int - 1:n_int, :]
        for t in range(pad + n_int, l_out_s1):   # S[t] = S[t-1] + x[L-1] - x[t-1-pad]
            j = t - 1 - pad
            s = s + xl - x[:, j:j + 1, :]
            put(slice(t, t + 1), s)

    # In-kernel strided subsample: only every stride-th window mean ever reaches HBM.
    if stride > 1:
        s_ref = scratch[0]
        n_out = o_ref.shape[1]

        def copy_row(i, carry):
            row = s_ref[:, pl.ds(i * stride, 1), :]
            o_ref[:, pl.ds(i, 1), :] = (row * inv_k).astype(o_ref.dtype)
            return carry

        jax.lax.fori_loop(0, n_out, copy_row, 0)


def _run(x3, kernel_size, stride, pad):
    """x3: [G, L, N] (time on axis 1, lanes on axis 2) -> [G, n_out, N]."""
    g, l, n = x3.shape
    l_out_s1 = l + 2 * pad - kernel_size + 1
    n_out = (l + 2 * pad - kernel_size) // stride + 1
    bt, ct, vmem_limit = _choose_tiles(
        g, l, n, l_out_s1, n_out, jnp.dtype(x3.dtype).itemsize, stride, kernel_size)
    grid = (pl.cdiv(g, bt), pl.cdiv(n, ct))

    kernel = functools.partial(
        _moving_avg_kernel, kernel_size=kernel_size, pad=pad, stride=stride)
    scratch_shapes = ()
    if stride > 1:
        scratch_shapes = (pltpu.VMEM((bt, l_out_s1, ct), jnp.float32),)

    return pl.pallas_call(
        kernel,
        out_shape=jax.ShapeDtypeStruct((g, n_out, n), x3.dtype),
        grid=grid,
        in_specs=[pl.BlockSpec((bt, l, ct), lambda i, j: (i, 0, j))],
        out_specs=pl.BlockSpec((bt, n_out, ct), lambda i, j: (i, 0, j)),
        scratch_shapes=scratch_shapes,
        compiler_params=pltpu.CompilerParams(
            dimension_semantics=("parallel", "parallel"),
            vmem_limit_bytes=vmem_limit),
    )(x3)


def moving_avg(x, kernel_size, stride):
    """x: [B, L, C] -> [B, L_out, C]; identical semantics to the PyTorch module."""
    b, l, c = x.shape
    pad = (kernel_size - 1) // 2

    if kernel_size > l:
        # Degenerate window-longer-than-series case: pre-pad in the wrapper (tiny tensor)
        # so the kernel's analytic-boundary math always has K <= L.
        front = jnp.repeat(x[:, :1, :], pad, axis=1)
        end = jnp.repeat(x[:, -1:, :], pad, axis=1)
        x = jnp.concatenate([front, x, end], axis=1)
        l = x.shape[1]
        pad = 0

    if c >= 128:
        # Native layout: no wrapper transposes, channels on lanes, batch on the grid.
        return _run(x, kernel_size, stride, pad)

    # Small channel count: lane-dense [1, L, B*C] layout (layout plumbing on a tensor
    # that is small in absolute terms; lane utilisation in the kernel matters more).
    xt = jnp.transpose(x, (1, 0, 2)).reshape(1, l, b * c)
    out = _run(xt, kernel_size, stride, pad)
    n_out = out.shape[1]
    return jnp.transpose(out.reshape(n_out, b, c), (1, 0, 2))


def _reference(x, kernel_size, stride):
    pad = (kernel_size - 1) // 2
    front = jnp.repeat(x[:, 0:1, :], pad, axis=1)
    end = jnp.repeat(x[:, -1:, :], pad, axis=1)
    xpad = jnp.concatenate([front, x, end], axis=1)
    l_pad = xpad.shape[1]
    l_out = (l_pad - kernel_size) // stride + 1
    outs = [
        jnp.mean(xpad[:, t * stride: t * stride + kernel_size, :], axis=1)
        for t in range(l_out)
    ]
    return jnp.stack(outs, axis=1)


if __name__ == "__main__":
    key = jax.random.PRNGKey(0)
    configs = [
        # (B, L, C, kernel_size, stride)
        (2, 32, 8, 25, 1),    # PatchTST series_decomp default (small-C, lane-dense path)
        (2, 32, 8, 4, 1),     # even kernel size ((K-1)//2 replicate pad on both sides)
        (2, 32, 8, 5, 2),     # stride > 1 (in-kernel subsampling)
        (2, 24, 128, 7, 1),   # C >= 128: native-layout, transpose-free path
        (2, 40, 256, 25, 3),  # native layout + stride > 1 + larger kernel
    ]
    for i, (B, L, C, K, S) in enumerate(configs):
        x = jax.random.normal(jax.random.fold_in(key, i), (B, L, C), dtype=jnp.float32)
        out = jax.block_until_ready(moving_avg(x, K, S))
        ref = _reference(x, K, S)
        assert out.shape == ref.shape, (i, out.shape, ref.shape)
        assert jnp.allclose(out, ref, atol=1e-5, rtol=1e-5), f"mismatch for config {i}"
    print("KERNEL_OK")
</pallas_src>

<mosaic_0001>
module attributes {stable_mosaic.version = 11 : i64} {
  func.func @_moving_avg_kernel(%arg0: i32, %arg1: i32, %arg2: memref<1x32x16xf32, #tpu.memory_space<vmem>>, %arg3: memref<1x32x16xf32, #tpu.memory_space<vmem>>) attributes {dimension_semantics = [#tpu.dimension_semantics<parallel>, #tpu.dimension_semantics<parallel>], iteration_bounds = array<i64: 1, 1>, scalar_prefetch = 0 : i64, scratch_operands = 0 : i64, tpu.core_type = #tpu.core_type<tc>, window_params = [{transform_indices = @transform_0, window_bounds = array<i64: 1, 32, 16>}, {transform_indices = @transform_1, window_bounds = array<i64: 1, 32, 16>}]} {
    %c0 = arith.constant 0 : index
    %c0_0 = arith.constant 0 : index
    %c0_1 = arith.constant 0 : index
    %0 = vector.load %arg2[%c0, %c0_0, %c0_1] : memref<1x32x16xf32, #tpu.memory_space<vmem>>, vector<1x32x16xf32>
    %1 = vector.extract_strided_slice %0 {offsets = [0, 0, 0], sizes = [1, 31, 16], strides = [1, 1, 1]} : vector<1x32x16xf32> to vector<1x31x16xf32>
    %2 = vector.extract_strided_slice %0 {offsets = [0, 1, 0], sizes = [1, 31, 16], strides = [1, 1, 1]} : vector<1x32x16xf32> to vector<1x31x16xf32>
    %3 = arith.addf %1, %2 : vector<1x31x16xf32>
    %4 = vector.extract_strided_slice %3 {offsets = [0, 0, 0], sizes = [1, 29, 16], strides = [1, 1, 1]} : vector<1x31x16xf32> to vector<1x29x16xf32>
    %5 = vector.extract_strided_slice %3 {offsets = [0, 2, 0], sizes = [1, 29, 16], strides = [1, 1, 1]} : vector<1x31x16xf32> to vector<1x29x16xf32>
    %6 = arith.addf %4, %5 : vector<1x29x16xf32>
    %7 = vector.extract_strided_slice %6 {offsets = [0, 0, 0], sizes = [1, 25, 16], strides = [1, 1, 1]} : vector<1x29x16xf32> to vector<1x25x16xf32>
    %8 = vector.extract_strided_slice %6 {offsets = [0, 4, 0], sizes = [1, 25, 16], strides = [1, 1, 1]} : vector<1x29x16xf32> to vector<1x25x16xf32>
    %9 = arith.addf %7, %8 : vector<1x25x16xf32>
    %10 = vector.extract_strided_slice %9 {offsets = [0, 0, 0], sizes = [1, 17, 16], strides = [1, 1, 1]} : vector<1x25x16xf32> to vector<1x17x16xf32>
    %11 = vector.extract_strided_slice %9 {offsets = [0, 8, 0], sizes = [1, 17, 16], strides = [1, 1, 1]} : vector<1x25x16xf32> to vector<1x17x16xf32>
    %12 = arith.addf %10, %11 : vector<1x17x16xf32>
    %13 = vector.extract_strided_slice %12 {offsets = [0, 0, 0], sizes = [1, 8, 16], strides = [1, 1, 1]} : vector<1x17x16xf32> to vector<1x8x16xf32>
    %14 = vector.extract_strided_slice %9 {offsets = [0, 16, 0], sizes = [1, 8, 16], strides = [1, 1, 1]} : vector<1x25x16xf32> to vector<1x8x16xf32>
    %15 = arith.addf %13, %14 : vector<1x8x16xf32>
    %16 = vector.extract_strided_slice %0 {offsets = [0, 24, 0], sizes = [1, 8, 16], strides = [1, 1, 1]} : vector<1x32x16xf32> to vector<1x8x16xf32>
    %17 = arith.addf %15, %16 : vector<1x8x16xf32>
    %cst = arith.constant 4.000000e-02 : f32
    %18 = vector.broadcast %cst : f32 to vector<1x8x16xf32>
    %19 = arith.mulf %17, %18 : vector<1x8x16xf32>
    %c0_2 = arith.constant 0 : index
    %c12 = arith.constant 12 : index
    %c0_3 = arith.constant 0 : index
    %20 = vector.load %arg3[%c0_2, %c12, %c0_3] : memref<1x32x16xf32, #tpu.memory_space<vmem>>, vector<1x8x16xf32>
    tpu.vector_store %arg3[%c0_2, %c12, %c0_3], %19 {strides = array<i32>} : memref<1x32x16xf32, #tpu.memory_space<vmem>>, vector<1x8x16xf32>,
    %21 = vector.extract_strided_slice %0 {offsets = [0, 0, 0], sizes = [1, 1, 16], strides = [1, 1, 1]} : vector<1x32x16xf32> to vector<1x1x16xf32>
    %22 = vector.extract_strided_slice %17 {offsets = [0, 0, 0], sizes = [1, 1, 16], strides = [1, 1, 1]} : vector<1x8x16xf32> to vector<1x1x16xf32>
    %23 = arith.addf %22, %21 : vector<1x1x16xf32>
    %24 = vector.extract_strided_slice %0 {offsets = [0, 24, 0], sizes = [1, 1, 16], strides = [1, 1, 1]} : vector<1x32x16xf32> to vector<1x1x16xf32>
    %25 = arith.subf %23, %24 : vector<1x1x16xf32>
    %cst_4 = arith.constant 4.000000e-02 : f32
    %26 = vector.broadcast %cst_4 : f32 to vector<1x1x16xf32>
    %27 = arith.mulf %25, %26 : vector<1x1x16xf32>
    %c0_5 = arith.constant 0 : index
    %c11 = arith.constant 11 : index
    %c0_6 = arith.constant 0 : index
    %28 = vector.load %arg3[%c0_5, %c11, %c0_6] : memref<1x32x16xf32, #tpu.memory_space<vmem>>, vector<1x1x16xf32>
    tpu.vector_store %arg3[%c0_5, %c11, %c0_6], %27 {strides = array<i32>} : memref<1x32x16xf32, #tpu.memory_space<vmem>>, vector<1x1x16xf32>,
    %29 = arith.addf %25, %21 : vector<1x1x16xf32>
    %30 = vector.extract_strided_slice %0 {offsets = [0, 23, 0], sizes = [1, 1, 16], strides = [1, 1, 1]} : vector<1x32x16xf32> to vector<1x1x16xf32>
    %31 = arith.subf %29, %30 : vector<1x1x16xf32>
    %cst_7 = arith.constant 4.000000e-02 : f32
    %32 = vector.broadcast %cst_7 : f32 to vector<1x1x16xf32>
    %33 = arith.mulf %31, %32 : vector<1x1x16xf32>
    %c0_8 = arith.constant 0 : index
    %c10 = arith.constant 10 : index
    %c0_9 = arith.constant 0 : index
    %34 = vector.load %arg3[%c0_8, %c10, %c0_9] : memref<1x32x16xf32, #tpu.memory_space<vmem>>, vector<1x1x16xf32>
    tpu.vector_store %arg3[%c0_8, %c10, %c0_9], %33 {strides = array<i32>} : memref<1x32x16xf32, #tpu.memory_space<vmem>>, vector<1x1x16xf32>,
    %35 = arith.addf %31, %21 : vector<1x1x16xf32>
    %36 = vector.extract_strided_slice %0 {offsets = [0, 22, 0], sizes = [1, 1, 16], strides = [1, 1, 1]} : vector<1x32x16xf32> to vector<1x1x16xf32>
    %37 = arith.subf %35, %36 : vector<1x1x16xf32>
    %cst_10 = arith.constant 4.000000e-02 : f32
    %38 = vector.broadcast %cst_10 : f32 to vector<1x1x16xf32>
    %39 = arith.mulf %37, %38 : vector<1x1x16xf32>
    %c0_11 = arith.constant 0 : index
    %c9 = arith.constant 9 : index
    %c0_12 = arith.constant 0 : index
    %40 = vector.load %arg3[%c0_11, %c9, %c0_12] : memref<1x32x16xf32, #tpu.memory_space<vmem>>, vector<1x1x16xf32>
    tpu.vector_store %arg3[%c0_11, %c9, %c0_12], %39 {strides = array<i32>} : memref<1x32x16xf32, #tpu.memory_space<vmem>>, vector<1x1x16xf32>,
    %41 = arith.addf %37, %21 : vector<1x1x16xf32>
    %42 = vector.extract_strided_slice %0 {offsets = [0, 21, 0], sizes = [1, 1, 16], strides = [1, 1, 1]} : vector<1x32x16xf32> to vector<1x1x16xf32>
    %43 = arith.subf %41, %42 : vector<1x1x16xf32>
    %cst_13 = arith.constant 4.000000e-02 : f32
    %44 = vector.broadcast %cst_13 : f32 to vector<1x1x16xf32>
    %45 = arith.mulf %43, %44 : vector<1x1x16xf32>
    %c0_14 = arith.constant 0 : index
    %c8 = arith.constant 8 : index
    %c0_15 = arith.constant 0 : index
    %46 = vector.load %arg3[%c0_14, %c8, %c0_15] : memref<1x32x16xf32, #tpu.memory_space<vmem>>, vector<1x1x16xf32>
    tpu.vector_store %arg3[%c0_14, %c8, %c0_15], %45 {strides = array<i32>} : memref<1x32x16xf32, #tpu.memory_space<vmem>>, vector<1x1x16xf32>,
    %47 = arith.addf %43, %21 : vector<1x1x16xf32>
    %48 = vector.extract_strided_slice %0 {offsets = [0, 20, 0], sizes = [1, 1, 16], strides = [1, 1, 1]} : vector<1x32x16xf32> to vector<1x1x16xf32>
    %49 = arith.subf %47, %48 : vector<1x1x16xf32>
    %cst_16 = arith.constant 4.000000e-02 : f32
    %50 = vector.broadcast %cst_16 : f32 to vector<1x1x16xf32>
    %51 = arith.mulf %49, %50 : vector<1x1x16xf32>
    %c0_17 = arith.constant 0 : index
    %c7 = arith.constant 7 : index
    %c0_18 = arith.constant 0 : index
    %52 = vector.load %arg3[%c0_17, %c7, %c0_18] : memref<1x32x16xf32, #tpu.memory_space<vmem>>, vector<1x1x16xf32>
    tpu.vector_store %arg3[%c0_17, %c7, %c0_18], %51 {strides = array<i32>} : memref<1x32x16xf32, #tpu.memory_space<vmem>>, vector<1x1x16xf32>,
    %53 = arith.addf %49, %21 : vector<1x1x16xf32>
    %54 = vector.extract_strided_slice %0 {offsets = [0, 19, 0], sizes = [1, 1, 16], strides = [1, 1, 1]} : vector<1x32x16xf32> to vector<1x1x16xf32>
    %55 = arith.subf %53, %54 : vector<1x1x16xf32>
    %cst_19 = arith.constant 4.000000e-02 : f32
    %56 = vector.broadcast %cst_19 : f32 to vector<1x1x16xf32>
    %57 = arith.mulf %55, %56 : vector<1x1x16xf32>
    %c0_20 = arith.constant 0 : index
    %c6 = arith.constant 6 : index
    %c0_21 = arith.constant 0 : index
    %58 = vector.load %arg3[%c0_20, %c6, %c0_21] : memref<1x32x16xf32, #tpu.memory_space<vmem>>, vector<1x1x16xf32>
    tpu.vector_store %arg3[%c0_20, %c6, %c0_21], %57 {strides = array<i32>} : memref<1x32x16xf32, #tpu.memory_space<vmem>>, vector<1x1x16xf32>,
    %59 = arith.addf %55, %21 : vector<1x1x16xf32>
    %60 = vector.extract_strided_slice %0 {offsets = [0, 18, 0], sizes = [1, 1, 16], strides = [1, 1, 1]} : vector<1x32x16xf32> to vector<1x1x16xf32>
    %61 = arith.subf %59, %60 : vector<1x1x16xf32>
    %cst_22 = arith.constant 4.000000e-02 : f32
    %62 = vector.broadcast %cst_22 : f32 to vector<1x1x16xf32>
    %63 = arith.mulf %61, %62 : vector<1x1x16xf32>
    %c0_23 = arith.constant 0 : index
    %c5 = arith.constant 5 : index
    %c0_24 = arith.constant 0 : index
    %64 = vector.load %arg3[%c0_23, %c5, %c0_24] : memref<1x32x16xf32, #tpu.memory_space<vmem>>, vector<1x1x16xf32>
    tpu.vector_store %arg3[%c0_23, %c5, %c0_24], %63 {strides = array<i32>} : memref<1x32x16xf32, #tpu.memory_space<vmem>>, vector<1x1x16xf32>,
    %65 = arith.addf %61, %21 : vector<1x1x16xf32>
    %66 = vector.extract_strided_slice %0 {offsets = [0, 17, 0], sizes = [1, 1, 16], strides = [1, 1, 1]} : vector<1x32x16xf32> to vector<1x1x16xf32>
    %67 = arith.subf %65, %66 : vector<1x1x16xf32>
    %cst_25 = arith.constant 4.000000e-02 : f32
    %68 = vector.broadcast %cst_25 : f32 to vector<1x1x16xf32>
    %69 = arith.mulf %67, %68 : vector<1x1x16xf32>
    %c0_26 = arith.constant 0 : index
    %c4 = arith.constant 4 : index
    %c0_27 = arith.constant 0 : index
    %70 = vector.load %arg3[%c0_26, %c4, %c0_27] : memref<1x32x16xf32, #tpu.memory_space<vmem>>, vector<1x1x16xf32>
    tpu.vector_store %arg3[%c0_26, %c4, %c0_27], %69 {strides = array<i32>} : memref<1x32x16xf32, #tpu.memory_space<vmem>>, vector<1x1x16xf32>,
    %71 = arith.addf %67, %21 : vector<1x1x16xf32>
    %72 = vector.extract_strided_slice %0 {offsets = [0, 16, 0], sizes = [1, 1, 16], strides = [1, 1, 1]} : vector<1x32x16xf32> to vector<1x1x16xf32>
    %73 = arith.subf %71, %72 : vector<1x1x16xf32>
    %cst_28 = arith.constant 4.000000e-02 : f32
    %74 = vector.broadcast %cst_28 : f32 to vector<1x1x16xf32>
    %75 = arith.mulf %73, %74 : vector<1x1x16xf32>
    %c0_29 = arith.constant 0 : index
    %c3 = arith.constant 3 : index
    %c0_30 = arith.constant 0 : index
    %76 = vector.load %arg3[%c0_29, %c3, %c0_30] : memref<1x32x16xf32, #tpu.memory_space<vmem>>, vector<1x1x16xf32>
    tpu.vector_store %arg3[%c0_29, %c3, %c0_30], %75 {strides = array<i32>} : memref<1x32x16xf32, #tpu.memory_space<vmem>>, vector<1x1x16xf32>,
    %77 = arith.addf %73, %21 : vector<1x1x16xf32>
    %78 = vector.extract_strided_slice %0 {offsets = [0, 15, 0], sizes = [1, 1, 16], strides = [1, 1, 1]} : vector<1x32x16xf32> to vector<1x1x16xf32>
    %79 = arith.subf %77, %78 : vector<1x1x16xf32>
    %cst_31 = arith.constant 4.000000e-02 : f32
    %80 = vector.broadcast %cst_31 : f32 to vector<1x1x16xf32>
    %81 = arith.mulf %79, %80 : vector<1x1x16xf32>
    %c0_32 = arith.constant 0 : index
    %c2 = arith.constant 2 : index
    %c0_33 = arith.constant 0 : index
    %82 = vector.load %arg3[%c0_32, %c2, %c0_33] : memref<1x32x16xf32, #tpu.memory_space<vmem>>, vector<1x1x16xf32>
    tpu.vector_store %arg3[%c0_32, %c2, %c0_33], %81 {strides = array<i32>} : memref<1x32x16xf32, #tpu.memory_space<vmem>>, vector<1x1x16xf32>,
    %83 = arith.addf %79, %21 : vector<1x1x16xf32>
    %84 = vector.extract_strided_slice %0 {offsets = [0, 14, 0], sizes = [1, 1, 16], strides = [1, 1, 1]} : vector<1x32x16xf32> to vector<1x1x16xf32>
    %85 = arith.subf %83, %84 : vector<1x1x16xf32>
    %cst_34 = arith.constant 4.000000e-02 : f32
    %86 = vector.broadcast %cst_34 : f32 to vector<1x1x16xf32>
    %87 = arith.mulf %85, %86 : vector<1x1x16xf32>
    %c0_35 = arith.constant 0 : index
    %c1 = arith.constant 1 : index
    %c0_36 = arith.constant 0 : index
    %88 = vector.load %arg3[%c0_35, %c1, %c0_36] : memref<1x32x16xf32, #tpu.memory_space<vmem>>, vector<1x1x16xf32>
    tpu.vector_store %arg3[%c0_35, %c1, %c0_36], %87 {strides = array<i32>} : memref<1x32x16xf32, #tpu.memory_space<vmem>>, vector<1x1x16xf32>,
    %89 = arith.addf %85, %21 : vector<1x1x16xf32>
    %90 = vector.extract_strided_slice %0 {offsets = [0, 13, 0], sizes = [1, 1, 16], strides = [1, 1, 1]} : vector<1x32x16xf32> to vector<1x1x16xf32>
    %91 = arith.subf %89, %90 : vector<1x1x16xf32>
    %cst_37 = arith.constant 4.000000e-02 : f32
    %92 = vector.broadcast %cst_37 : f32 to vector<1x1x16xf32>
    %93 = arith.mulf %91, %92 : vector<1x1x16xf32>
    %c0_38 = arith.constant 0 : index
    %c0_39 = arith.constant 0 : index
    %c0_40 = arith.constant 0 : index
    %94 = vector.load %arg3[%c0_38, %c0_39, %c0_40] : memref<1x32x16xf32, #tpu.memory_space<vmem>>, vector<1x1x16xf32>
    tpu.vector_store %arg3[%c0_38, %c0_39, %c0_40], %93 {strides = array<i32>} : memref<1x32x16xf32, #tpu.memory_space<vmem>>, vector<1x1x16xf32>,
    %95 = vector.extract_strided_slice %0 {offsets = [0, 31, 0], sizes = [1, 1, 16], strides = [1, 1, 1]} : vector<1x32x16xf32> to vector<1x1x16xf32>
    %96 = vector.extract_strided_slice %17 {offsets = [0, 7, 0], sizes = [1, 1, 16], strides = [1, 1, 1]} : vector<1x8x16xf32> to vector<1x1x16xf32>
    %97 = arith.addf %96, %95 : vector<1x1x16xf32>
    %98 = vector.extract_strided_slice %0 {offsets = [0, 7, 0], sizes = [1, 1, 16], strides = [1, 1, 1]} : vector<1x32x16xf32> to vector<1x1x16xf32>
    %99 = arith.subf %97, %98 : vector<1x1x16xf32>
    %cst_41 = arith.constant 4.000000e-02 : f32
    %100 = vector.broadcast %cst_41 : f32 to vector<1x1x16xf32>
    %101 = arith.mulf %99, %100 : vector<1x1x16xf32>
    %c0_42 = arith.constant 0 : index
    %c20 = arith.constant 20 : index
    %c0_43 = arith.constant 0 : index
    %102 = vector.load %arg3[%c0_42, %c20, %c0_43] : memref<1x32x16xf32, #tpu.memory_space<vmem>>, vector<1x1x16xf32>
    tpu.vector_store %arg3[%c0_42, %c20, %c0_43], %101 {strides = array<i32>} : memref<1x32x16xf32, #tpu.memory_space<vmem>>, vector<1x1x16xf32>,
    %103 = arith.addf %99, %95 : vector<1x1x16xf32>
    %104 = vector.extract_strided_slice %0 {offsets = [0, 8, 0], sizes = [1, 1, 16], strides = [1, 1, 1]} : vector<1x32x16xf32> to vector<1x1x16xf32>
    %105 = arith.subf %103, %104 : vector<1x1x16xf32>
    %cst_44 = arith.constant 4.000000e-02 : f32
    %106 = vector.broadcast %cst_44 : f32 to vector<1x1x16xf32>
    %107 = arith.mulf %105, %106 : vector<1x1x16xf32>
    %c0_45 = arith.constant 0 : index
    %c21 = arith.constant 21 : index
    %c0_46 = arith.constant 0 : index
    %108 = vector.load %arg3[%c0_45, %c21, %c0_46] : memref<1x32x16xf32, #tpu.memory_space<vmem>>, vector<1x1x16xf32>
    tpu.vector_store %arg3[%c0_45, %c21, %c0_46], %107 {strides = array<i32>} : memref<1x32x16xf32, #tpu.memory_space<vmem>>, vector<1x1x16xf32>,
    %109 = arith.addf %105, %95 : vector<1x1x16xf32>
    %110 = vector.extract_strided_slice %0 {offsets = [0, 9, 0], sizes = [1, 1, 16], strides = [1, 1, 1]} : vector<1x32x16xf32> to vector<1x1x16xf32>
    %111 = arith.subf %109, %110 : vector<1x1x16xf32>
    %cst_47 = arith.constant 4.000000e-02 : f32
    %112 = vector.broadcast %cst_47 : f32 to vector<1x1x16xf32>
    %113 = arith.mulf %111, %112 : vector<1x1x16xf32>
    %c0_48 = arith.constant 0 : index
    %c22 = arith.constant 22 : index
    %c0_49 = arith.constant 0 : index
    %114 = vector.load %arg3[%c0_48, %c22, %c0_49] : memref<1x32x16xf32, #tpu.memory_space<vmem>>, vector<1x1x16xf32>
    tpu.vector_store %arg3[%c0_48, %c22, %c0_49], %113 {strides = array<i32>} : memref<1x32x16xf32, #tpu.memory_space<vmem>>, vector<1x1x16xf32>,
    %115 = arith.addf %111, %95 : vector<1x1x16xf32>
    %116 = vector.extract_strided_slice %0 {offsets = [0, 10, 0], sizes = [1, 1, 16], strides = [1, 1, 1]} : vector<1x32x16xf32> to vector<1x1x16xf32>
    %117 = arith.subf %115, %116 : vector<1x1x16xf32>
    %cst_50 = arith.constant 4.000000e-02 : f32
    %118 = vector.broadcast %cst_50 : f32 to vector<1x1x16xf32>
    %119 = arith.mulf %117, %118 : vector<1x1x16xf32>
    %c0_51 = arith.constant 0 : index
    %c23 = arith.constant 23 : index
    %c0_52 = arith.constant 0 : index
    %120 = vector.load %arg3[%c0_51, %c23, %c0_52] : memref<1x32x16xf32, #tpu.memory_space<vmem>>, vector<1x1x16xf32>
    tpu.vector_store %arg3[%c0_51, %c23, %c0_52], %119 {strides = array<i32>} : memref<1x32x16xf32, #tpu.memory_space<vmem>>, vector<1x1x16xf32>,
    %121 = arith.addf %117, %95 : vector<1x1x16xf32>
    %122 = vector.extract_strided_slice %0 {offsets = [0, 11, 0], sizes = [1, 1, 16], strides = [1, 1, 1]} : vector<1x32x16xf32> to vector<1x1x16xf32>
    %123 = arith.subf %121, %122 : vector<1x1x16xf32>
    %cst_53 = arith.constant 4.000000e-02 : f32
    %124 = vector.broadcast %cst_53 : f32 to vector<1x1x16xf32>
    %125 = arith.mulf %123, %124 : vector<1x1x16xf32>
    %c0_54 = arith.constant 0 : index
    %c24 = arith.constant 24 : index
    %c0_55 = arith.constant 0 : index
    %126 = vector.load %arg3[%c0_54, %c24, %c0_55] : memref<1x32x16xf32, #tpu.memory_space<vmem>>, vector<1x1x16xf32>
    tpu.vector_store %arg3[%c0_54, %c24, %c0_55], %125 {strides = array<i32>} : memref<1x32x16xf32, #tpu.memory_space<vmem>>, vector<1x1x16xf32>,
    %127 = arith.addf %123, %95 : vector<1x1x16xf32>
    %128 = vector.extract_strided_slice %0 {offsets = [0, 12, 0], sizes = [1, 1, 16], strides = [1, 1, 1]} : vector<1x32x16xf32> to vector<1x1x16xf32>
    %129 = arith.subf %127, %128 : vector<1x1x16xf32>
    %cst_56 = arith.constant 4.000000e-02 : f32
    %130 = vector.broadcast %cst_56 : f32 to vector<1x1x16xf32>
    %131 = arith.mulf %129, %130 : vector<1x1x16xf32>
    %c0_57 = arith.constant 0 : index
    %c25 = arith.constant 25 : index
    %c0_58 = arith.constant 0 : index
    %132 = vector.load %arg3[%c0_57, %c25, %c0_58] : memref<1x32x16xf32, #tpu.memory_space<vmem>>, vector<1x1x16xf32>
    tpu.vector_store %arg3[%c0_57, %c25, %c0_58], %131 {strides = array<i32>} : memref<1x32x16xf32, #tpu.memory_space<vmem>>, vector<1x1x16xf32>,
    %133 = arith.addf %129, %95 : vector<1x1x16xf32>
    %134 = vector.extract_strided_slice %0 {offsets = [0, 13, 0], sizes = [1, 1, 16], strides = [1, 1, 1]} : vector<1x32x16xf32> to vector<1x1x16xf32>
    %135 = arith.subf %133, %134 : vector<1x1x16xf32>
    %cst_59 = arith.constant 4.000000e-02 : f32
    %136 = vector.broadcast %cst_59 : f32 to vector<1x1x16xf32>
    %137 = arith.mulf %135, %136 : vector<1x1x16xf32>
    %c0_60 = arith.constant 0 : index
    %c26 = arith.constant 26 : index
    %c0_61 = arith.constant 0 : index
    %138 = vector.load %arg3[%c0_60, %c26, %c0_61] : memref<1x32x16xf32, #tpu.memory_space<vmem>>, vector<1x1x16xf32>
    tpu.vector_store %arg3[%c0_60, %c26, %c0_61], %137 {strides = array<i32>} : memref<1x32x16xf32, #tpu.memory_space<vmem>>, vector<1x1x16xf32>,
    %139 = arith.addf %135, %95 : vector<1x1x16xf32>
    %140 = vector.extract_strided_slice %0 {offsets = [0, 14, 0], sizes = [1, 1, 16], strides = [1, 1, 1]} : vector<1x32x16xf32> to vector<1x1x16xf32>
    %141 = arith.subf %139, %140 : vector<1x1x16xf32>
    %cst_62 = arith.constant 4.000000e-02 : f32
    %142 = vector.broadcast %cst_62 : f32 to vector<1x1x16xf32>
    %143 = arith.mulf %141, %142 : vector<1x1x16xf32>
    %c0_63 = arith.constant 0 : index
    %c27 = arith.constant 27 : index
    %c0_64 = arith.constant 0 : index
    %144 = vector.load %arg3[%c0_63, %c27, %c0_64] : memref<1x32x16xf32, #tpu.memory_space<vmem>>, vector<1x1x16xf32>
    tpu.vector_store %arg3[%c0_63, %c27, %c0_64], %143 {strides = array<i32>} : memref<1x32x16xf32, #tpu.memory_space<vmem>>, vector<1x1x16xf32>,
    %145 = arith.addf %141, %95 : vector<1x1x16xf32>
    %146 = vector.extract_strided_slice %0 {offsets = [0, 15, 0], sizes = [1, 1, 16], strides = [1, 1, 1]} : vector<1x32x16xf32> to vector<1x1x16xf32>
    %147 = arith.subf %145, %146 : vector<1x1x16xf32>
    %cst_65 = arith.constant 4.000000e-02 : f32
    %148 = vector.broadcast %cst_65 : f32 to vector<1x1x16xf32>
    %149 = arith.mulf %147, %148 : vector<1x1x16xf32>
    %c0_66 = arith.constant 0 : index
    %c28 = arith.constant 28 : index
    %c0_67 = arith.constant 0 : index
    %150 = vector.load %arg3[%c0_66, %c28, %c0_67] : memref<1x32x16xf32, #tpu.memory_space<vmem>>, vector<1x1x16xf32>
    tpu.vector_store %arg3[%c0_66, %c28, %c0_67], %149 {strides = array<i32>} : memref<1x32x16xf32, #tpu.memory_space<vmem>>, vector<1x1x16xf32>,
    %151 = arith.addf %147, %95 : vector<1x1x16xf32>
    %152 = vector.extract_strided_slice %0 {offsets = [0, 16, 0], sizes = [1, 1, 16], strides = [1, 1, 1]} : vector<1x32x16xf32> to vector<1x1x16xf32>
    %153 = arith.subf %151, %152 : vector<1x1x16xf32>
    %cst_68 = arith.constant 4.000000e-02 : f32
    %154 = vector.broadcast %cst_68 : f32 to vector<1x1x16xf32>
    %155 = arith.mulf %153, %154 : vector<1x1x16xf32>
    %c0_69 = arith.constant 0 : index
    %c29 = arith.constant 29 : index
    %c0_70 = arith.constant 0 : index
    %156 = vector.load %arg3[%c0_69, %c29, %c0_70] : memref<1x32x16xf32, #tpu.memory_space<vmem>>, vector<1x1x16xf32>
    tpu.vector_store %arg3[%c0_69, %c29, %c0_70], %155 {strides = array<i32>} : memref<1x32x16xf32, #tpu.memory_space<vmem>>, vector<1x1x16xf32>,
    %157 = arith.addf %153, %95 : vector<1x1x16xf32>
    %158 = vector.extract_strided_slice %0 {offsets = [0, 17, 0], sizes = [1, 1, 16], strides = [1, 1, 1]} : vector<1x32x16xf32> to vector<1x1x16xf32>
    %159 = arith.subf %157, %158 : vector<1x1x16xf32>
    %cst_71 = arith.constant 4.000000e-02 : f32
    %160 = vector.broadcast %cst_71 : f32 to vector<1x1x16xf32>
    %161 = arith.mulf %159, %160 : vector<1x1x16xf32>
    %c0_72 = arith.constant 0 : index
    %c30 = arith.constant 30 : index
    %c0_73 = arith.constant 0 : index
    %162 = vector.load %arg3[%c0_72, %c30, %c0_73] : memref<1x32x16xf32, #tpu.memory_space<vmem>>, vector<1x1x16xf32>
    tpu.vector_store %arg3[%c0_72, %c30, %c0_73], %161 {strides = array<i32>} : memref<1x32x16xf32, #tpu.memory_space<vmem>>, vector<1x1x16xf32>,
    %163 = arith.addf %159, %95 : vector<1x1x16xf32>
    %164 = vector.extract_strided_slice %0 {offsets = [0, 18, 0], sizes = [1, 1, 16], strides = [1, 1, 1]} : vector<1x32x16xf32> to vector<1x1x16xf32>
    %165 = arith.subf %163, %164 : vector<1x1x16xf32>
    %cst_74 = arith.constant 4.000000e-02 : f32
    %166 = vector.broadcast %cst_74 : f32 to vector<1x1x16xf32>
    %167 = arith.mulf %165, %166 : vector<1x1x16xf32>
    %c0_75 = arith.constant 0 : index
    %c31 = arith.constant 31 : index
    %c0_76 = arith.constant 0 : index
    %168 = vector.load %arg3[%c0_75, %c31, %c0_76] : memref<1x32x16xf32, #tpu.memory_space<vmem>>, vector<1x1x16xf32>
    tpu.vector_store %arg3[%c0_75, %c31, %c0_76], %167 {strides = array<i32>} : memref<1x32x16xf32, #tpu.memory_space<vmem>>, vector<1x1x16xf32>,
    return
  }
  func.func @transform_0(%arg0: i32, %arg1: i32) -> (i32, i32, i32) {
    %c0_i32 = arith.constant 0 : i32
    %c0_i32_0 = arith.constant 0 : i32
    return %arg0, %c0_i32, %arg1 : i32, i32, i32
  }
  func.func @transform_1(%arg0: i32, %arg1: i32) -> (i32, i32, i32) {
    %c0_i32 = arith.constant 0 : i32
    %c0_i32_0 = arith.constant 0 : i32
    return %arg0, %c0_i32, %arg1 : i32, i32, i32
  }
}

</mosaic_0001>

<llo_original>
// kernel: tpu_custom_call.1
$region0: #{tpu_custom_call.1}
  #allocation0 [shape = 'u32[]', space=smem, size = 0x4, offset = 0x4, fixed_abs, tag = 'smem constant byte address 0x4 - core index']
  #allocation1 [shape = 'u32[144,128]{1,0:T(1,128)}', space=vmem, size = 0x12000, scoped, tag = 'internal scratch']
  %s0 = inlined_call_operand.vmem [shape: f32[1,32,16], index: 0, kind: input, shape index: {}]
  %s1 = inlined_call_operand.vmem [shape: f32[1,32,16], index: 1, kind: output, shape index: {}]
  %s2 = sld [smem:[#allocation0]]
  $region14: #{tpu_custom_call.1} parent=0
    _
  %s4 = ssub.s32 1, %s2
  %s5 = scalar_select 0, %s4, %s2
  // Predicated region
  $region2: #{tpu_custom_call.1} parent=0 // pred_check
    _
  $region3: #{tpu_custom_call.1} parent=0 // pred_check_branch
    %7 = sbr.rel (0) target = $region5
  $region4: #{tpu_custom_call.1} parent=0 // pred_region
    _
  $region5: #{tpu_custom_call.1} parent=0 // pred_fallthru
    _
  %v8 = vld [vmem:[%s0] sm:$0xff]
  %v9 = vld [vmem:[%s0 + $0x8] sm:$0xff]
  %v10 = vld [vmem:[%s0 + $0x10] sm:$0xff]
  %v11 = vld [vmem:[%s0 + $0x18] sm:$0xff]
  %vm16 = vcmask 1046528
  %v17 = vrot.slane %v8, 1
  %v18 = vrot.slane %v9, 1
  %v19 = vsel %vm16, %v17, %v18
  %v20 = vrot.slane %v10, 1
  %v21 = vsel %vm16, %v18, %v20
  %v22 = vrot.slane %v11, 1
  %v23 = vsel %vm16, %v20, %v22
  %v28 = vadd.f32 %v8, %v19
  %v29 = vadd.f32 %v9, %v21
  %v30 = vadd.f32 %v10, %v23
  %v31 = vadd.f32 %v11, %v22
  %vm36 = vcmask 1045504
  %v37 = vrot.slane %v28, 2
  %v38 = vrot.slane %v29, 2
  %v39 = vsel %vm36, %v37, %v38
  %v40 = vrot.slane %v30, 2
  %v41 = vsel %vm36, %v38, %v40
  %v42 = vrot.slane %v31, 2
  %v43 = vsel %vm36, %v40, %v42
  %v48 = vadd.f32 %v28, %v39
  %v49 = vadd.f32 %v29, %v41
  %v50 = vadd.f32 %v30, %v43
  %v51 = vadd.f32 %v31, %v42
  %vm56 = vcmask 1043456
  %v57 = vrot.slane %v48, 4
  %v58 = vrot.slane %v49, 4
  %v59 = vsel %vm56, %v57, %v58
  %v60 = vrot.slane %v50, 4
  %v61 = vsel %vm56, %v58, %v60
  %v62 = vrot.slane %v51, 4
  %v63 = vsel %vm56, %v60, %v62
  %v67 = vadd.f32 %v48, %v59
  %v68 = vadd.f32 %v49, %v61
  %v69 = vadd.f32 %v50, %v63
  %v70 = vadd.f32 %v67, %v68
  %v71 = vadd.f32 %v70, %v69
  %v72 = vadd.f32 %v71, %v11
  %v73 = vmul.f32 %v72, 0.04
  %vm74 = vcmask 130048
  %75 = vst.msk [vmem:[%s1 + $0xc] sm:$0xff] %vm74, %v73
  %v76 = vadd.f32 %v72, %v8
  %v77 = vsub.f32 %v76, %v11
  %v78 = vmul.f32 %v77, 0.04
  %vm79 = vcmask 122880
  %80 = vst.msk [vmem:[%s1 + $0xb] sm:$0x1] %vm79, %v78
  %v81 = vadd.f32 %v77, %v8
  %v82 = vrot.slane %v10, 7
  %v84 = vsub.f32 %v81, %v82
  %v85 = vmul.f32 %v84, 0.04
  %86 = vst.msk [vmem:[%s1 + $0xa] sm:$0x1] %vm79, %v85
  %v87 = vadd.f32 %v84, %v8
  %v88 = vrot.slane %v10, 6
  %v90 = vsub.f32 %v87, %v88
  %v91 = vmul.f32 %v90, 0.04
  %92 = vst.msk [vmem:[%s1 + $0x9] sm:$0x1] %vm79, %v91
  %v93 = vadd.f32 %v90, %v8
  %v94 = vrot.slane %v10, 5
  %v96 = vsub.f32 %v93, %v94
  %v97 = vmul.f32 %v96, 0.04
  %98 = vst.msk [vmem:[%s1 + $0x8] sm:$0x1] %vm79, %v97
  %v99 = vadd.f32 %v96, %v8
  %v100 = vrot.slane %v10, 4
  %v102 = vsub.f32 %v99, %v100
  %v103 = vmul.f32 %v102, 0.04
  %104 = vst.msk [vmem:[%s1 + $0x7] sm:$0x1] %vm79, %v103
  %v105 = vadd.f32 %v102, %v8
  %v106 = vrot.slane %v10, 3
  %v108 = vsub.f32 %v105, %v106
  %v109 = vmul.f32 %v108, 0.04
  %110 = vst.msk [vmem:[%s1 + $0x6] sm:$0x1] %vm79, %v109
  %v111 = vadd.f32 %v108, %v8
  %v112 = vrot.slane %v10, 2
  %v114 = vsub.f32 %v111, %v112
  %v115 = vmul.f32 %v114, 0.04
  %116 = vst.msk [vmem:[%s1 + $0x5] sm:$0x1] %vm79, %v115
  %v117 = vadd.f32 %v114, %v8
  %v119 = vsub.f32 %v117, %v20
  %v120 = vmul.f32 %v119, 0.04
  %121 = vst.msk [vmem:[%s1 + $0x4] sm:$0x1] %vm79, %v120
  %v122 = vadd.f32 %v119, %v8
  %v123 = vsub.f32 %v122, %v10
  %v124 = vmul.f32 %v123, 0.04
  %125 = vst.msk [vmem:[%s1 + $0x3] sm:$0x1] %vm79, %v124
  %v126 = vadd.f32 %v123, %v8
  %v127 = vrot.slane %v9, 7
  %v129 = vsub.f32 %v126, %v127
  %v130 = vmul.f32 %v129, 0.04
  %131 = vst.msk [vmem:[%s1 + $0x2] sm:$0x1] %vm79, %v130
  %v132 = vadd.f32 %v129, %v8
  %v133 = vrot.slane %v9, 6
  %v135 = vsub.f32 %v132, %v133
  %v136 = vmul.f32 %v135, 0.04
  %137 = vst.msk [vmem:[%s1 + $0x1] sm:$0x1] %vm79, %v136
  %v138 = vadd.f32 %v135, %v8
  %v139 = vrot.slane %v9, 5
  %v141 = vsub.f32 %v138, %v139
  %v142 = vmul.f32 %v141, 0.04
  %143 = vst.msk [vmem:[%s1] sm:$0x1] %vm79, %v142
  %v144 = vadd.f32 %v72, %v11
  %v145 = vsub.f32 %v144, %v8
  %v146 = vmul.f32 %v145, 0.04
  %vm147 = vcmask 130055
  %148 = vst.msk [vmem:[%s1 + $0xd] sm:$0x80] %vm147, %v146
  %v149 = vadd.f32 %v145, %v11
  %v151 = vsub.f32 %v149, %v18
  %v152 = vmul.f32 %v151, 0.04
  %153 = vst.msk [vmem:[%s1 + $0xe] sm:$0x80] %vm147, %v152
  %v154 = vadd.f32 %v151, %v11
  %v155 = vrot.slane %v9, 2
  %v157 = vsub.f32 %v154, %v155
  %v158 = vmul.f32 %v157, 0.04
  %159 = vst.msk [vmem:[%s1 + $0xf] sm:$0x80] %vm147, %v158
  %v160 = vadd.f32 %v157, %v11
  %v161 = vrot.slane %v9, 3
  %v163 = vsub.f32 %v160, %v161
  %v164 = vmul.f32 %v163, 0.04
  %165 = vst.msk [vmem:[%s1 + $0x10] sm:$0x80] %vm147, %v164
  %v166 = vadd.f32 %v163, %v11
  %v167 = vrot.slane %v9, 4
  %v169 = vsub.f32 %v166, %v167
  %v170 = vmul.f32 %v169, 0.04
  %171 = vst.msk [vmem:[%s1 + $0x11] sm:$0x80] %vm147, %v170
  %v172 = vadd.f32 %v169, %v11
  %v173 = vsub.f32 %v172, %v139
  %v174 = vmul.f32 %v173, 0.04
  %175 = vst.msk [vmem:[%s1 + $0x12] sm:$0x80] %vm147, %v174
  %v176 = vadd.f32 %v173, %v11
  %v177 = vsub.f32 %v176, %v133
  %v178 = vmul.f32 %v177, 0.04
  %179 = vst.msk [vmem:[%s1 + $0x13] sm:$0x80] %vm147, %v178
  %v180 = vadd.f32 %v177, %v11
  %v181 = vsub.f32 %v180, %v127
  %v182 = vmul.f32 %v181, 0.04
  %183 = vst.msk [vmem:[%s1 + $0x14] sm:$0x80] %vm147, %v182
  %v184 = vadd.f32 %v181, %v11
  %v185 = vsub.f32 %v184, %v9
  %v186 = vmul.f32 %v185, 0.04
  %187 = vst.msk [vmem:[%s1 + $0x15] sm:$0x80] %vm147, %v186
  %v188 = vadd.f32 %v185, %v11
  %v189 = vsub.f32 %v188, %v20
  %v190 = vmul.f32 %v189, 0.04
  %191 = vst.msk [vmem:[%s1 + $0x16] sm:$0x80] %vm147, %v190
  %v192 = vadd.f32 %v189, %v11
  %v193 = vsub.f32 %v192, %v112
  %v194 = vmul.f32 %v193, 0.04
  %195 = vst.msk [vmem:[%s1 + $0x17] sm:$0x80] %vm147, %v194
  %v196 = vadd.f32 %v193, %v11
  %v197 = vsub.f32 %v196, %v106
  %v198 = vmul.f32 %v197, 0.04
  %199 = vst.msk [vmem:[%s1 + $0x18] sm:$0x80] %vm147, %v198
  // Predicated region
  $region6: #{tpu_custom_call.1} parent=0 // pred_check
    _
  $region7: #{tpu_custom_call.1} parent=0 // pred_check_branch
    %201 = sbr.rel (0) target = $region9
  $region8: #{tpu_custom_call.1} parent=0 // pred_region
    _
  $region9: #{tpu_custom_call.1} parent=0 // pred_fallthru
    _
  // Predicated region
  $region10: #{tpu_custom_call.1} parent=0 // pred_check
    _
  $region11: #{tpu_custom_call.1} parent=0 // pred_check_branch
    %203 = sbr.rel (0) target = $region13
  $region12: #{tpu_custom_call.1} parent=0 // pred_region
    _
  $region13: #{tpu_custom_call.1} parent=0 // pred_fallthru
    _

</llo_original>
